<compile_context>
chip_gen: v7x
topology: tpu7x:2x2x1
jax: 0.10.0
libtpu: 0.0.40
codegen_flags: <defaults>
</compile_context>

<pallas_src>
import jax
import jax.numpy as jnp
from jax.experimental import pallas as pl
from jax.experimental.pallas import tpu as pltpu

H1, H2 = 50, 200           # true hidden widths from the PyTorch module
H1_PAD, H2_PAD = 128, 256  # lane-dense padded hidden widths
LANE = 128                 # lane width used only for padded fc3 *compute*


def _round_up(n, m):
    return (n + m - 1) // m * m


def mlp_kernel(x_ref, w1_ref, b1_ref, w2_ref, b2_ref, w3_ref, b3_ref, o_ref):
    n_out = o_ref.shape[-1]
    # fc1 + relu   (padded lanes: 0*w + 0 bias -> relu -> 0, stays inert)
    h1 = jnp.dot(x_ref[...], w1_ref[...], preferred_element_type=jnp.float32)
    h1 = jnp.maximum(h1 + b1_ref[...], 0.0)
    # fc2 + relu
    h2 = jnp.dot(h1, w2_ref[...], preferred_element_type=jnp.float32)
    h2 = jnp.maximum(h2 + b2_ref[...], 0.0)
    # fc3 + clamp: compute against lane-dense padded w3, store only the real columns.
    y = jnp.dot(h2, w3_ref[...], preferred_element_type=jnp.float32)
    y = jnp.clip(y + b3_ref[...], -5.0, 5.0)
    o_ref[...] = y[:, :n_out]


def pad_params(params):
    """Zero-pad weights/biases to lane-dense shapes consumed by the kernel."""
    def pad2(a, rows, cols):
        return jnp.pad(a, ((0, rows - a.shape[0]), (0, cols - a.shape[1])))

    n_in = params["w1"].shape[0]
    out_pad = _round_up(params["w3"].shape[1], LANE)
    return {
        "w1": pad2(params["w1"], n_in, H1_PAD),
        "b1": pad2(params["b1"], 1, H1_PAD),
        "w2": pad2(params["w2"], H1_PAD, H2_PAD),
        "b2": pad2(params["b2"], 1, H2_PAD),
        "w3": pad2(params["w3"], H2_PAD, out_pad),
        "b3": pad2(params["b3"], 1, out_pad),
    }


def net_forward(x, params, *, tile_b=2048):
    """x: (B, n_input) f32. params: un-padded dict from init_params."""
    B, n_in = x.shape
    n_out = params["w3"].shape[1]
    out_pad = _round_up(n_out, LANE)

    p = pad_params(params)

    # Batch tile: multiple of 8 (sublane constraint), clamped so the grid has
    # >= 2 steps whenever B allows (v7x megacore needs multiple steps to shard).
    tb = min(_round_up(max(tile_b, 8), 8), _round_up(pl.cdiv(B, 2), 8))
    tb = max(8, tb)
    n_steps = pl.cdiv(B, tb)  # ragged last block handled by Pallas

    # Weights/biases: constant index_map -> fetched once, VMEM-resident across steps.
    const2 = lambda i: (0, 0)
    x_spec = pl.BlockSpec((tb, n_in), lambda i: (i, 0))
    o_spec = pl.BlockSpec((tb, n_out), lambda i: (i, 0))
    w_specs = [pl.BlockSpec(p[k].shape, const2)
               for k in ("w1", "b1", "w2", "b2", "w3", "b3")]

    # Advisory cost estimate: actual MXU work and actually-transferred bytes.
    flops = 2 * B * (n_in * H1_PAD + H1_PAD * H2_PAD + H2_PAD * out_pad)
    weight_bytes = sum(int(v.size) * 4 for v in p.values())
    bytes_accessed = int(x.size) * 4 + weight_bytes + B * n_out * 4
    cost = pl.CostEstimate(flops=flops, transcendentals=0,
                           bytes_accessed=bytes_accessed)

    out = pl.pallas_call(
        mlp_kernel,
        out_shape=jax.ShapeDtypeStruct((B, n_out), jnp.float32),
        grid=(n_steps,),
        in_specs=[x_spec] + w_specs,
        out_specs=o_spec,
        compiler_params=pltpu.CompilerParams(
            dimension_semantics=("parallel",),   # shard batch across TCs on v7x
            vmem_limit_bytes=32 << 20,           # safe on v5e/v6e/v7x; ample headroom
        ),
        cost_estimate=cost,
    )(x, p["w1"], p["b1"], p["w2"], p["b2"], p["w3"], p["b3"])

    return out


def init_params(key, n_input, n_output):
    """Deterministic init mimicking nn.Linear default: U(-1/sqrt(fan_in), 1/sqrt(fan_in))."""
    dims = [(n_input, H1), (H1, H2), (H2, n_output)]
    params = {}
    for i, (fan_in, fan_out) in enumerate(dims, start=1):
        key, kw, kb = jax.random.split(key, 3)
        bound = 1.0 / jnp.sqrt(float(fan_in))
        # stored already transposed: (in, out)
        params[f"w{i}"] = jax.random.uniform(
            kw, (fan_in, fan_out), jnp.float32, -bound, bound)
        params[f"b{i}"] = jax.random.uniform(
            kb, (1, fan_out), jnp.float32, -bound, bound)
    return params


def _reference(x, params):
    h1 = jnp.maximum(x @ params["w1"] + params["b1"], 0.0)
    h2 = jnp.maximum(h1 @ params["w2"] + params["b2"], 0.0)
    return jnp.clip(h2 @ params["w3"] + params["b3"], -5.0, 5.0)


if __name__ == "__main__":
    key = jax.random.PRNGKey(0)
    n_input, n_output = 32, 4

    kx, kp, kx2 = jax.random.split(key, 3)
    params = init_params(kp, n_input, n_output)

    # Small batch (single grid step).
    batch = 8
    x = jax.random.normal(kx, (batch, n_input), jnp.float32)
    out = net_forward(x, params)
    jax.block_until_ready(out)

    assert out.shape == (batch, n_output)
    assert bool(jnp.all(out >= -5.0)) and bool(jnp.all(out <= 5.0))
    assert bool(jnp.allclose(out, _reference(x, params), atol=1e-5, rtol=1e-5))

    # Larger, non-multiple batch: exercises the multi-step grid, pipelining and
    # the ragged last block (no host-side padding).
    batch2 = 1000
    x2 = jax.random.normal(kx2, (batch2, n_input), jnp.float32)
    out2 = net_forward(x2, params, tile_b=256)
    jax.block_until_ready(out2)

    assert out2.shape == (batch2, n_output)
    assert bool(jnp.all(out2 >= -5.0)) and bool(jnp.all(out2 <= 5.0))
    assert bool(jnp.allclose(out2, _reference(x2, params), atol=1e-5, rtol=1e-5))

    print("KERNEL_OK")
</pallas_src>

<mosaic_0001>
module attributes {stable_mosaic.version = 11 : i64} {
  func.func @mlp_kernel(%arg0: i32, %arg1: memref<8x32xf32, #tpu.memory_space<vmem>>, %arg2: memref<32x128xf32, #tpu.memory_space<vmem>>, %arg3: memref<1x128xf32, #tpu.memory_space<vmem>>, %arg4: memref<128x256xf32, #tpu.memory_space<vmem>>, %arg5: memref<1x256xf32, #tpu.memory_space<vmem>>, %arg6: memref<256x128xf32, #tpu.memory_space<vmem>>, %arg7: memref<1x128xf32, #tpu.memory_space<vmem>>, %arg8: memref<8x4xf32, #tpu.memory_space<vmem>>) attributes {dimension_semantics = [#tpu.dimension_semantics<parallel>], iteration_bounds = array<i64: 1>, scalar_prefetch = 0 : i64, scratch_operands = 0 : i64, tpu.core_type = #tpu.core_type<tc>, window_params = [{transform_indices = @transform_0, window_bounds = array<i64: 8, 32>}, {pipeline_mode = #tpu.pipeline_mode<synchronous>, transform_indices = @transform_1, window_bounds = array<i64: 32, 128>}, {pipeline_mode = #tpu.pipeline_mode<synchronous>, transform_indices = @transform_2, window_bounds = array<i64: 1, 128>}, {pipeline_mode = #tpu.pipeline_mode<synchronous>, transform_indices = @transform_3, window_bounds = array<i64: 128, 256>}, {pipeline_mode = #tpu.pipeline_mode<synchronous>, transform_indices = @transform_4, window_bounds = array<i64: 1, 256>}, {pipeline_mode = #tpu.pipeline_mode<synchronous>, transform_indices = @transform_5, window_bounds = array<i64: 256, 128>}, {pipeline_mode = #tpu.pipeline_mode<synchronous>, transform_indices = @transform_6, window_bounds = array<i64: 1, 128>}, {transform_indices = @transform_7, window_bounds = array<i64: 8, 4>}]} {
    %c0 = arith.constant 0 : index
    %c0_0 = arith.constant 0 : index
    %0 = vector.load %arg1[%c0, %c0_0] : memref<8x32xf32, #tpu.memory_space<vmem>>, vector<8x32xf32>
    %c0_1 = arith.constant 0 : index
    %c0_2 = arith.constant 0 : index
    %1 = vector.load %arg2[%c0_1, %c0_2] : memref<32x128xf32, #tpu.memory_space<vmem>>, vector<32x128xf32>
    %cst = arith.constant dense<0.000000e+00> : vector<8x128xf32>
    %2 = tpu.matmul %0, %1, %cst {dimension_numbers = #tpu.dot_dimension_numbers<[1], [0], [0], [1], [0, 0, 1, 1], [], []>} : vector<8x32xf32>, vector<32x128xf32>, vector<8x128xf32> -> vector<8x128xf32>
    %c0_3 = arith.constant 0 : index
    %c0_4 = arith.constant 0 : index
    %3 = vector.load %arg3[%c0_3, %c0_4] : memref<1x128xf32, #tpu.memory_space<vmem>>, vector<1x128xf32>
    %4 = vector.broadcast %3 : vector<1x128xf32> to vector<8x128xf32>
    %5 = arith.addf %2, %4 : vector<8x128xf32>
    %cst_5 = arith.constant 0.000000e+00 : f32
    %6 = vector.broadcast %cst_5 : f32 to vector<8x128xf32>
    %7 = arith.maximumf %5, %6 : vector<8x128xf32>
    %c0_6 = arith.constant 0 : index
    %c0_7 = arith.constant 0 : index
    %8 = vector.load %arg4[%c0_6, %c0_7] : memref<128x256xf32, #tpu.memory_space<vmem>>, vector<128x256xf32>
    %cst_8 = arith.constant dense<0.000000e+00> : vector<8x256xf32>
    %9 = tpu.matmul %7, %8, %cst_8 {dimension_numbers = #tpu.dot_dimension_numbers<[1], [0], [0], [1], [0, 0, 1, 1], [], []>} : vector<8x128xf32>, vector<128x256xf32>, vector<8x256xf32> -> vector<8x256xf32>
    %c0_9 = arith.constant 0 : index
    %c0_10 = arith.constant 0 : index
    %10 = vector.load %arg5[%c0_9, %c0_10] : memref<1x256xf32, #tpu.memory_space<vmem>>, vector<1x256xf32>
    %11 = vector.broadcast %10 : vector<1x256xf32> to vector<8x256xf32>
    %12 = arith.addf %9, %11 : vector<8x256xf32>
    %cst_11 = arith.constant 0.000000e+00 : f32
    %13 = vector.broadcast %cst_11 : f32 to vector<8x256xf32>
    %14 = arith.maximumf %12, %13 : vector<8x256xf32>
    %c0_12 = arith.constant 0 : index
    %c0_13 = arith.constant 0 : index
    %15 = vector.load %arg6[%c0_12, %c0_13] : memref<256x128xf32, #tpu.memory_space<vmem>>, vector<256x128xf32>
    %cst_14 = arith.constant dense<0.000000e+00> : vector<8x128xf32>
    %16 = tpu.matmul %14, %15, %cst_14 {dimension_numbers = #tpu.dot_dimension_numbers<[1], [0], [0], [1], [0, 0, 1, 1], [], []>} : vector<8x256xf32>, vector<256x128xf32>, vector<8x128xf32> -> vector<8x128xf32>
    %c0_15 = arith.constant 0 : index
    %c0_16 = arith.constant 0 : index
    %17 = vector.load %arg7[%c0_15, %c0_16] : memref<1x128xf32, #tpu.memory_space<vmem>>, vector<1x128xf32>
    %18 = vector.broadcast %17 : vector<1x128xf32> to vector<8x128xf32>
    %19 = arith.addf %16, %18 : vector<8x128xf32>
    %cst_17 = arith.constant -5.000000e+00 : f32
    %cst_18 = arith.constant 5.000000e+00 : f32
    %20 = vector.broadcast %cst_17 : f32 to vector<8x128xf32>
    %21 = arith.maximumf %20, %19 : vector<8x128xf32>
    %22 = vector.broadcast %cst_18 : f32 to vector<8x128xf32>
    %23 = arith.minimumf %22, %21 : vector<8x128xf32>
    %24 = vector.extract_strided_slice %23 {offsets = [0, 0], sizes = [8, 4], strides = [1, 1]} : vector<8x128xf32> to vector<8x4xf32>
    %c0_19 = arith.constant 0 : index
    %c0_20 = arith.constant 0 : index
    %25 = vector.load %arg8[%c0_19, %c0_20] : memref<8x4xf32, #tpu.memory_space<vmem>>, vector<8x4xf32>
    tpu.vector_store %arg8[%c0_19, %c0_20], %24 {strides = array<i32>} : memref<8x4xf32, #tpu.memory_space<vmem>>, vector<8x4xf32>,
    return
  }
  func.func @transform_0(%arg0: i32) -> (i32, i32) {
    %c0_i32 = arith.constant 0 : i32
    %c0_i32_0 = arith.constant 0 : i32
    return %arg0, %c0_i32 : i32, i32
  }
  func.func @transform_1(%arg0: i32) -> (i32, i32) {
    %c0_i32 = arith.constant 0 : i32
    %c0_i32_0 = arith.constant 0 : i32
    %c0_i32_1 = arith.constant 0 : i32
    return %c0_i32, %c0_i32_0 : i32, i32
  }
  func.func @transform_2(%arg0: i32) -> (i32, i32) {
    %c0_i32 = arith.constant 0 : i32
    %c0_i32_0 = arith.constant 0 : i32
    %c0_i32_1 = arith.constant 0 : i32
    return %c0_i32, %c0_i32_0 : i32, i32
  }
  func.func @transform_3(%arg0: i32) -> (i32, i32) {
    %c0_i32 = arith.constant 0 : i32
    %c0_i32_0 = arith.constant 0 : i32
    %c0_i32_1 = arith.constant 0 : i32
    return %c0_i32, %c0_i32_0 : i32, i32
  }
  func.func @transform_4(%arg0: i32) -> (i32, i32) {
    %c0_i32 = arith.constant 0 : i32
    %c0_i32_0 = arith.constant 0 : i32
    %c0_i32_1 = arith.constant 0 : i32
    return %c0_i32, %c0_i32_0 : i32, i32
  }
  func.func @transform_5(%arg0: i32) -> (i32, i32) {
    %c0_i32 = arith.constant 0 : i32
    %c0_i32_0 = arith.constant 0 : i32
    %c0_i32_1 = arith.constant 0 : i32
    return %c0_i32, %c0_i32_0 : i32, i32
  }
  func.func @transform_6(%arg0: i32) -> (i32, i32) {
    %c0_i32 = arith.constant 0 : i32
    %c0_i32_0 = arith.constant 0 : i32
    %c0_i32_1 = arith.constant 0 : i32
    return %c0_i32, %c0_i32_0 : i32, i32
  }
  func.func @transform_7(%arg0: i32) -> (i32, i32) {
    %c0_i32 = arith.constant 0 : i32
    %c0_i32_0 = arith.constant 0 : i32
    return %arg0, %c0_i32 : i32, i32
  }
}

</mosaic_0001>

<llo_original>
// kernel: tpu_custom_call.1
$region0: #{tpu_custom_call.1}
  #allocation0 [shape = 'u32[]', space=smem, size = 0x4, offset = 0x4, fixed_abs, tag = 'smem constant byte address 0x4 - core index']
  #allocation1 [shape = 'u32[144,128]{1,0:T(1,128)}', space=vmem, size = 0x12000, scoped, tag = 'internal scratch']
  %s0 = inlined_call_operand.hbm [shape: f32[8,32], index: 0, kind: input, shape index: {}]
  %s1 = inlined_call_operand.hbm [shape: f32[32,128], index: 1, kind: input, shape index: {}]
  %s2 = inlined_call_operand.vmem [shape: f32[1,128], index: 2, kind: input, shape index: {}]
  %s3 = inlined_call_operand.hbm [shape: f32[128,256], index: 3, kind: input, shape index: {}]
  %s4 = inlined_call_operand.vmem [shape: f32[1,256], index: 4, kind: input, shape index: {}]
  %s5 = inlined_call_operand.hbm [shape: f32[256,128], index: 5, kind: input, shape index: {}]
  %s6 = inlined_call_operand.vmem [shape: f32[1,128], index: 6, kind: input, shape index: {}]
  %s7 = inlined_call_operand.vmem [shape: f32[8,4], index: 7, kind: output, shape index: {}]
  %s8 = sld [smem:[#allocation0]]
  $region54: #{tpu_custom_call.1} parent=0
    _
  %s10 = ssub.s32 1, %s8
  %s11 = scalar_select 0, %s10, %s8
  $region1: #{tpu_custom_call.1} parent=0
    #allocation2 [shape = 'u8[4096]{0}', space=vmem, size = 0x1000, scoped, tag = 'input window, operand 0, single buffered']
    #allocation3 [shape = 's32[1]{0}', space=sflag, size = 0x4, scoped, tag = 'scoped memory for tpu_custom_call.1']
    #allocation4 [shape = 'u8[16384]{0}', space=vmem, size = 0x4000, scoped, tag = 'input window, operand 1, single buffered']
    #allocation5 [shape = 's32[1]{0}', space=sflag, size = 0x4, scoped, tag = 'scoped memory for tpu_custom_call.1']
    #allocation6 [shape = 'u8[131072]{0}', space=vmem, size = 0x20000, scoped, tag = 'input window, operand 3, single buffered']
    #allocation7 [shape = 'u8[131072]{0}', space=vmem, size = 0x20000, scoped, tag = 'input window, operand 5, single buffered']
    #allocation8 [shape = 's32[1]{0}', space=sflag, size = 0x4, scoped, tag = 'scoped memory for tpu_custom_call.1']
    %12 = vsyncpa [#allocation3], 0
    %13 = vsyncpa [#allocation5], 0
    %14 = vsyncpa [#allocation8], 0
    // Predicated region
    $region2: #{tpu_custom_call.1} parent=1 // pred_check
      _
    $region3: #{tpu_custom_call.1} parent=1 // pred_check_branch
      %16 = sbr.rel (0) target = $region5
    $region4: #{tpu_custom_call.1} parent=1 // pred_region
      %s18 = ssub.s32 128, 128
      %19 = vsyncadd [#allocation3], %s18
      %s21 = sshll.u32 [#allocation2], 4
      %s22 = int_to_ptr.vmem [resolvable:$true] %s21
      %24 = dma.hbm_to_vmem [thread:$0]  %s0, 128, %s22, [#allocation3]
    $region5: #{tpu_custom_call.1} parent=1 // pred_fallthru
      _
    // Predicated region
    $region6: #{tpu_custom_call.1} parent=1 // pred_check
      _
    $region7: #{tpu_custom_call.1} parent=1 // pred_check_branch
      %26 = sbr.rel (0) target = $region9
    $region8: #{tpu_custom_call.1} parent=1 // pred_region
      %s28 = ssub.s32 512, 512
      %29 = vsyncadd [#allocation5], %s28
      %s30 = sshll.u32 [#allocation4], 4
      %s31 = int_to_ptr.vmem [resolvable:$true] %s30
      %36 = dma.hbm_to_vmem [thread:$0]  %s1, 512, %s31, [#allocation5], 128, 128, 8
    $region9: #{tpu_custom_call.1} parent=1 // pred_fallthru
      _
    // Predicated region
    $region10: #{tpu_custom_call.1} parent=1 // pred_check
      _
    $region11: #{tpu_custom_call.1} parent=1 // pred_check_branch
      %38 = sbr.rel (0) target = $region13
    $region12: #{tpu_custom_call.1} parent=1 // pred_region
      _
    $region13: #{tpu_custom_call.1} parent=1 // pred_fallthru
      _
    // Predicated region
    $region14: #{tpu_custom_call.1} parent=1 // pred_check
      _
    $region15: #{tpu_custom_call.1} parent=1 // pred_check_branch
      %40 = sbr.rel (0) target = $region17
    $region16: #{tpu_custom_call.1} parent=1 // pred_region
      %s42 = ssub.s32 4096, 4096
      %43 = vsyncadd [#allocation5], %s42
      %s44 = sshll.u32 [#allocation6], 4
      %s45 = int_to_ptr.vmem [resolvable:$true] %s44
      %50 = dma.hbm_to_vmem [thread:$0]  %s3, 4096, %s45, [#allocation5], 256, 256, 16
    $region17: #{tpu_custom_call.1} parent=1 // pred_fallthru
      _
    // Predicated region
    $region18: #{tpu_custom_call.1} parent=1 // pred_check
      _
    $region19: #{tpu_custom_call.1} parent=1 // pred_check_branch
      %52 = sbr.rel (0) target = $region21
    $region20: #{tpu_custom_call.1} parent=1 // pred_region
      _
    $region21: #{tpu_custom_call.1} parent=1 // pred_fallthru
      _
    // Predicated region
    $region22: #{tpu_custom_call.1} parent=1 // pred_check
      _
    $region23: #{tpu_custom_call.1} parent=1 // pred_check_branch
      %54 = sbr.rel (0) target = $region25
    $region24: #{tpu_custom_call.1} parent=1 // pred_region
      %s56 = ssub.s32 4096, 4096
      %57 = vsyncadd [#allocation8], %s56
      %s58 = sshll.u32 [#allocation7], 4
      %s59 = int_to_ptr.vmem [resolvable:$true] %s58
      %64 = dma.hbm_to_vmem [thread:$0]  %s5, 4096, %s59, [#allocation8], 128, 128, 8
    $region25: #{tpu_custom_call.1} parent=1 // pred_fallthru
      _
    // Predicated region
    $region26: #{tpu_custom_call.1} parent=1 // pred_check
      _
    $region27: #{tpu_custom_call.1} parent=1 // pred_check_branch
      %66 = sbr.rel (0) target = $region29
    $region28: #{tpu_custom_call.1} parent=1 // pred_region
      _
    $region29: #{tpu_custom_call.1} parent=1 // pred_fallthru
      _
    // Predicated region
    $region30: #{tpu_custom_call.1} parent=1 // pred_check
      _
    $region31: #{tpu_custom_call.1} parent=1 // pred_check_branch
      %68 = sbr.rel (0) target = $region33
    $region32: #{tpu_custom_call.1} parent=1 // pred_region
      %69 = dma.done [#allocation3], 128
    $region33: #{tpu_custom_call.1} parent=1 // pred_fallthru
      _
    // Predicated region
    $region34: #{tpu_custom_call.1} parent=1 // pred_check
      _
    $region35: #{tpu_custom_call.1} parent=1 // pred_check_branch
      %71 = sbr.rel (0) target = $region37
    $region36: #{tpu_custom_call.1} parent=1 // pred_region
      %72 = dma.done [#allocation5], 512
    $region37: #{tpu_custom_call.1} parent=1 // pred_fallthru
      _
    // Predicated region
    $region38: #{tpu_custom_call.1} parent=1 // pred_check
      _
    $region39: #{tpu_custom_call.1} parent=1 // pred_check_branch
      %74 = sbr.rel (0) target = $region41
    $region40: #{tpu_custom_call.1} parent=1 // pred_region
      %75 = dma.done [#allocation5], 4096
    $region41: #{tpu_custom_call.1} parent=1 // pred_fallthru
      _
    // Predicated region
    $region42: #{tpu_custom_call.1} parent=1 // pred_check
      _
    $region43: #{tpu_custom_call.1} parent=1 // pred_check_branch
      %77 = sbr.rel (0) target = $region45
    $region44: #{tpu_custom_call.1} parent=1 // pred_region
      %78 = dma.done [#allocation8], 4096
    $region45: #{tpu_custom_call.1} parent=1 // pred_fallthru
      _
    %v79 = vld [vmem:[#allocation2] sm:$0xff]
    %v80 = vld [vmem:[#allocation4] sm:$0xff]
    %v81 = vld [vmem:[#allocation4 + $0x8] sm:$0xff]
    %v82 = vld [vmem:[#allocation4 + $0x10] sm:$0xff]
    %v83 = vld [vmem:[#allocation4 + $0x18] sm:$0xff]
    %v84 = vld [vmem:[%s2] sm:$0x1]
    %v86 = vlaneseq
    %v87 = vshrl.u32 %v86, 7
    %v88 = vsub.s32 0, %v87
    %v89 = vrot.slane %v84, %v88
    %vm91 = vcmask 261120
    %v93 = vsel %vm91, %v79, 0
    %95 = vmatprep.subr.mxu0 0.0
    %96 = vmatpush1.msra.mxu0 %v80
    %97 = vmatprep.subr.mxu0 0.0
    %98 = vmatpush1.msra.mxu0 %v81
    %99 = vmatprep.subr.mxu0 0.0
    %100 = vmatpush1.msra.mxu0 %v82
    %101 = vmatprep.subr.mxu0 0.0
    %102 = vmatpush1.msra.mxu0 %v83
    %103 = vmatprep.subr.mxu0 0.0
    %104 = vmatpush1.msra.mxu0 0.0
    %105 = vmatprep.subr.mxu0 0.0
    %106 = vmatpush1.msra.mxu0 0.0
    %107 = vmatprep.subr.mxu0 0.0
    %108 = vmatpush1.msra.mxu0 0.0
    %109 = vmatprep.subr.mxu0 0.0
    %110 = vmatpush1.msra.mxu0 0.0
    %111 = vmatprep.subr.mxu0 0.0
    %112 = vmatpush1.msra.mxu0 0.0
    %113 = vmatprep.subr.mxu0 0.0
    %114 = vmatpush1.msra.mxu0 0.0
    %115 = vmatprep.subr.mxu0 0.0
    %116 = vmatpush1.msra.mxu0 0.0
    %117 = vmatprep.subr.mxu0 0.0
    %118 = vmatpush1.msra.mxu0 0.0
    %119 = vmatprep.subr.mxu0 0.0
    %120 = vmatpush1.msra.mxu0 0.0
    %121 = vmatprep.subr.mxu0 0.0
    %122 = vmatpush1.msra.mxu0 0.0
    %123 = vmatprep.subr.mxu0 0.0
    %124 = vmatpush1.msra.mxu0 0.0
    %125 = vmatprep.subr.mxu0 0.0
    %126 = vmatpush1.msra.mxu0 0.0
    %127 = vmatprep.subr.mxu0 0.0
    %128 = vmatpush1.msra.mxu0 0.0
    %129 = vmatprep.subr.mxu0 0.0
    %130 = vmatpush1.msra.mxu0 0.0
    %131 = vmatprep.subr.mxu0 0.0
    %132 = vmatpush1.msra.mxu0 0.0
    %133 = vmatprep.subr.mxu0 0.0
    %134 = vmatpush1.msra.mxu0 0.0
    %135 = vmatprep.subr.mxu0 0.0
    %136 = vmatpush1.msra.mxu0 0.0
    %137 = vmatprep.subr.mxu0 0.0
    %138 = vmatpush1.msra.mxu0 0.0
    %139 = vmatprep.subr.mxu0 0.0
    %140 = vmatpush1.msra.mxu0 0.0
    %141 = vmatprep.subr.mxu0 0.0
    %142 = vmatpush1.msra.mxu0 0.0
    %143 = vmatprep.subr.mxu0 0.0
    %144 = vmatpush1.msra.mxu0 0.0
    %145 = vmatprep.subr.mxu0 0.0
    %146 = vmatpush1.msra.mxu0 0.0
    %147 = vmatprep.subr.mxu0 0.0
    %148 = vmatpush1.msra.mxu0 0.0
    %149 = vmatprep.subr.mxu0 0.0
    %150 = vmatpush1.msra.mxu0 0.0
    %151 = vmatprep.subr.mxu0 0.0
    %152 = vmatpush1.msra.mxu0 0.0
    %153 = vmatprep.subr.mxu0 0.0
    %154 = vmatpush1.msra.mxu0 0.0
    %155 = vmatprep.subr.mxu0 0.0
    %156 = vmatpush1.msra.mxu0 0.0
    %157 = vmatprep.subr.mxu0 0.0
    %158 = vmatpush1.msra.mxu0 0.0
    %159 = vmatprep.mubr.f32.mxu0 0.0
    %160 = vmatmul.mubr.f32.gmra.mrb[0].mxu0 %v93
    %v161 = vpop.f32.mrb[0].mxu0
    %v162 = vadd.f32 %v89, %v161
    %v163 = vpop.f32.mrb[0].mxu0
    %164 = vdwg.mxu0
    %v165 = vmax.f32 %v162, 0.0
    %v166 = vld [vmem:[#allocation6] sm:$0xff]
    %v167 = vld [vmem:[#allocation6 + $0x8] sm:$0xff]
    %v168 = vld [vmem:[#allocation6 + $0x10] sm:$0xff]
    %v169 = vld [vmem:[#allocation6 + $0x18] sm:$0xff]
    %v170 = vld [vmem:[#allocation6 + $0x20] sm:$0xff]
    %v171 = vld [vmem:[#allocation6 + $0x28] sm:$0xff]
    %v172 = vld [vmem:[#allocation6 + $0x30] sm:$0xff]
    %v173 = vld [vmem:[#allocation6 + $0x38] sm:$0xff]
    %v174 = vld [vmem:[#allocation6 + $0x40] sm:$0xff]
    %v175 = vld [vmem:[#allocation6 + $0x48] sm:$0xff]
    %v176 = vld [vmem:[#allocation6 + $0x50] sm:$0xff]
    %v177 = vld [vmem:[#allocation6 + $0x58] sm:$0xff]
    %v178 = vld [vmem:[#allocation6 + $0x60] sm:$0xff]
    %v179 = vld [vmem:[#allocation6 + $0x68] sm:$0xff]
    %v180 = vld [vmem:[#allocation6 + $0x70] sm:$0xff]
    %v181 = vld [vmem:[#allocation6 + $0x78] sm:$0xff]
    %v182 = vld [vmem:[#allocation6 + $0x80] sm:$0xff]
    %v183 = vld [vmem:[#allocation6 + $0x88] sm:$0xff]
    %v184 = vld [vmem:[#allocation6 + $0x90] sm:$0xff]
    %v185 = vld [vmem:[#allocation6 + $0x98] sm:$0xff]
    %v186 = vld [vmem:[#allocation6 + $0xa0] sm:$0xff]
    %v187 = vld [vmem:[#allocation6 + $0xa8] sm:$0xff]
    %v188 = vld [vmem:[#allocation6 + $0xb0] sm:$0xff]
    %v189 = vld [vmem:[#allocation6 + $0xb8] sm:$0xff]
    %v190 = vld [vmem:[#allocation6 + $0xc0] sm:$0xff]
    %v191 = vld [vmem:[#allocation6 + $0xc8] sm:$0xff]
    %v192 = vld [vmem:[#allocation6 + $0xd0] sm:$0xff]
    %v193 = vld [vmem:[#allocation6 + $0xd8] sm:$0xff]
    %v194 = vld [vmem:[#allocation6 + $0xe0] sm:$0xff]
    %v195 = vld [vmem:[#allocation6 + $0xe8] sm:$0xff]
    %v196 = vld [vmem:[#allocation6 + $0xf0] sm:$0xff]
    %v197 = vld [vmem:[#allocation6 + $0xf8] sm:$0xff]
    %v198 = vld [vmem:[%s4] sm:$0x3]
    %v200 = vlaneseq
    %v201 = vshrl.u32 %v200, 7
    %v202 = vsub.s32 0, %v201
    %v203 = vrot.slane %v198, %v202
    %v204 = vlaneseq
    %v205 = vshrl.u32 %v204, 7
    %v206 = vsub.s32 1, %v205
    %v207 = vrot.slane %v198, %v206
    %210 = vmatprep.subr.mxu0 %v167
    %211 = vmatpush1.msra.mxu0 %v166
    %212 = vmatprep.subr.mxu0 %v169
    %213 = vmatpush1.msra.mxu0 %v168
    %214 = vmatprep.subr.mxu0 %v171
    %215 = vmatpush1.msra.mxu0 %v170
    %216 = vmatprep.subr.mxu0 %v173
    %217 = vmatpush1.msra.mxu0 %v172
    %218 = vmatprep.subr.mxu0 %v175
    %219 = vmatpush1.msra.mxu0 %v174
    %220 = vmatprep.subr.mxu0 %v177
    %221 = vmatpush1.msra.mxu0 %v176
    %222 = vmatprep.subr.mxu0 %v179
    %223 = vmatpush1.msra.mxu0 %v178
    %224 = vmatprep.subr.mxu0 %v181
    %225 = vmatpush1.msra.mxu0 %v180
    %226 = vmatprep.subr.mxu0 %v183
    %227 = vmatpush1.msra.mxu0 %v182
    %228 = vmatprep.subr.mxu0 %v185
    %229 = vmatpush1.msra.mxu0 %v184
    %230 = vmatprep.subr.mxu0 %v187
    %231 = vmatpush1.msra.mxu0 %v186
    %232 = vmatprep.subr.mxu0 %v189
    %233 = vmatpush1.msra.mxu0 %v188
    %234 = vmatprep.subr.mxu0 %v191
    %235 = vmatpush1.msra.mxu0 %v190
    %236 = vmatprep.subr.mxu0 %v193
    %237 = vmatpush1.msra.mxu0 %v192
    %238 = vmatprep.subr.mxu0 %v195
    %239 = vmatpush1.msra.mxu0 %v194
    %240 = vmatprep.subr.mxu0 %v197
    %241 = vmatpush1.msra.mxu0 %v196
    %242 = vmatprep.subr.mxu0 0.0
    %243 = vmatpush1.msra.mxu0 0.0
    %244 = vmatprep.subr.mxu0 0.0
    %245 = vmatpush1.msra.mxu0 0.0
    %246 = vmatprep.subr.mxu0 0.0
    %247 = vmatpush1.msra.mxu0 0.0
    %248 = vmatprep.subr.mxu0 0.0
    %249 = vmatpush1.msra.mxu0 0.0
    %250 = vmatprep.subr.mxu0 0.0
    %251 = vmatpush1.msra.mxu0 0.0
    %252 = vmatprep.subr.mxu0 0.0
    %253 = vmatpush1.msra.mxu0 0.0
    %254 = vmatprep.subr.mxu0 0.0
    %255 = vmatpush1.msra.mxu0 0.0
    %256 = vmatprep.subr.mxu0 0.0
    %257 = vmatpush1.msra.mxu0 0.0
    %258 = vmatprep.subr.mxu0 0.0
    %259 = vmatpush1.msra.mxu0 0.0
    %260 = vmatprep.subr.mxu0 0.0
    %261 = vmatpush1.msra.mxu0 0.0
    %262 = vmatprep.subr.mxu0 0.0
    %263 = vmatpush1.msra.mxu0 0.0
    %264 = vmatprep.subr.mxu0 0.0
    %265 = vmatpush1.msra.mxu0 0.0
    %266 = vmatprep.subr.mxu0 0.0
    %267 = vmatpush1.msra.mxu0 0.0
    %268 = vmatprep.subr.mxu0 0.0
    %269 = vmatpush1.msra.mxu0 0.0
    %270 = vmatprep.subr.mxu0 0.0
    %271 = vmatpush1.msra.mxu0 0.0
    %272 = vmatprep.subr.mxu0 0.0
    %273 = vmatpush1.msra.mxu0 0.0
    %274 = vmatprep.mubr.f32.mxu0 0.0
    %275 = vmatmul.mubr.f32.gmra.mrb[0].mxu0 %v165
    %v276 = vpop.f32.mrb[0].mxu0
    %v277 = vadd.f32 %v203, %v276
    %v278 = vpop.f32.mrb[0].mxu0
    %v279 = vadd.f32 %v207, %v278
    %280 = vdwg.mxu0
    %v281 = vmax.f32 %v277, 0.0
    %v282 = vmax.f32 %v279, 0.0
    %v283 = vld [vmem:[#allocation7] sm:$0xff]
    %v284 = vld [vmem:[#allocation7 + $0x8] sm:$0xff]
    %v285 = vld [vmem:[#allocation7 + $0x10] sm:$0xff]
    %v286 = vld [vmem:[#allocation7 + $0x18] sm:$0xff]
    %v287 = vld [vmem:[#allocation7 + $0x20] sm:$0xff]
    %v288 = vld [vmem:[#allocation7 + $0x28] sm:$0xff]
    %v289 = vld [vmem:[#allocation7 + $0x30] sm:$0xff]
    %v290 = vld [vmem:[#allocation7 + $0x38] sm:$0xff]
    %v291 = vld [vmem:[#allocation7 + $0x40] sm:$0xff]
    %v292 = vld [vmem:[#allocation7 + $0x48] sm:$0xff]
    %v293 = vld [vmem:[#allocation7 + $0x50] sm:$0xff]
    %v294 = vld [vmem:[#allocation7 + $0x58] sm:$0xff]
    %v295 = vld [vmem:[#allocation7 + $0x60] sm:$0xff]
    %v296 = vld [vmem:[#allocation7 + $0x68] sm:$0xff]
    %v297 = vld [vmem:[#allocation7 + $0x70] sm:$0xff]
    %v298 = vld [vmem:[#allocation7 + $0x78] sm:$0xff]
    %v299 = vld [vmem:[#allocation7 + $0x80] sm:$0xff]
    %v300 = vld [vmem:[#allocation7 + $0x88] sm:$0xff]
    %v301 = vld [vmem:[#allocation7 + $0x90] sm:$0xff]
    %v302 = vld [vmem:[#allocation7 + $0x98] sm:$0xff]
    %v303 = vld [vmem:[#allocation7 + $0xa0] sm:$0xff]
    %v304 = vld [vmem:[#allocation7 + $0xa8] sm:$0xff]
    %v305 = vld [vmem:[#allocation7 + $0xb0] sm:$0xff]
    %v306 = vld [vmem:[#allocation7 + $0xb8] sm:$0xff]
    %v307 = vld [vmem:[#allocation7 + $0xc0] sm:$0xff]
    %v308 = vld [vmem:[#allocation7 + $0xc8] sm:$0xff]
    %v309 = vld [vmem:[#allocation7 + $0xd0] sm:$0xff]
    %v310 = vld [vmem:[#allocation7 + $0xd8] sm:$0xff]
    %v311 = vld [vmem:[#allocation7 + $0xe0] sm:$0xff]
    %v312 = vld [vmem:[#allocation7 + $0xe8] sm:$0xff]
    %v313 = vld [vmem:[#allocation7 + $0xf0] sm:$0xff]
    %v314 = vld [vmem:[#allocation7 + $0xf8] sm:$0xff]
    %v315 = vld [vmem:[%s6] sm:$0x1]
    %v317 = vlaneseq
    %v318 = vshrl.u32 %v317, 7
    %v319 = vsub.s32 0, %v318
    %v320 = vrot.slane %v315, %v319
    %322 = vmatprep.subr.mxu0 0.0
    %323 = vmatpush1.msra.mxu0 %v283
    %324 = vmatprep.subr.mxu0 0.0
    %325 = vmatpush1.msra.mxu0 %v284
    %326 = vmatprep.subr.mxu0 0.0
    %327 = vmatpush1.msra.mxu0 %v285
    %328 = vmatprep.subr.mxu0 0.0
    %329 = vmatpush1.msra.mxu0 %v286
    %330 = vmatprep.subr.mxu0 0.0
    %331 = vmatpush1.msra.mxu0 %v287
    %332 = vmatprep.subr.mxu0 0.0
    %333 = vmatpush1.msra.mxu0 %v288
    %334 = vmatprep.subr.mxu0 0.0
    %335 = vmatpush1.msra.mxu0 %v289
    %336 = vmatprep.subr.mxu0 0.0
    %337 = vmatpush1.msra.mxu0 %v290
    %338 = vmatprep.subr.mxu0 0.0
    %339 = vmatpush1.msra.mxu0 %v291
    %340 = vmatprep.subr.mxu0 0.0
    %341 = vmatpush1.msra.mxu0 %v292
    %342 = vmatprep.subr.mxu0 0.0
    %343 = vmatpush1.msra.mxu0 %v293
    %344 = vmatprep.subr.mxu0 0.0
    %345 = vmatpush1.msra.mxu0 %v294
    %346 = vmatprep.subr.mxu0 0.0
    %347 = vmatpush1.msra.mxu0 %v295
    %348 = vmatprep.subr.mxu0 0.0
    %349 = vmatpush1.msra.mxu0 %v296
    %350 = vmatprep.subr.mxu0 0.0
    %351 = vmatpush1.msra.mxu0 %v297
    %352 = vmatprep.subr.mxu0 0.0
    %353 = vmatpush1.msra.mxu0 %v298
    %354 = vmatprep.subr.mxu0 0.0
    %355 = vmatpush1.msra.mxu0 %v299
    %356 = vmatprep.subr.mxu0 0.0
    %357 = vmatpush1.msra.mxu0 %v300
    %358 = vmatprep.subr.mxu0 0.0
    %359 = vmatpush1.msra.mxu0 %v301
    %360 = vmatprep.subr.mxu0 0.0
    %361 = vmatpush1.msra.mxu0 %v302
    %362 = vmatprep.subr.mxu0 0.0
    %363 = vmatpush1.msra.mxu0 %v303
    %364 = vmatprep.subr.mxu0 0.0
    %365 = vmatpush1.msra.mxu0 %v304
    %366 = vmatprep.subr.mxu0 0.0
    %367 = vmatpush1.msra.mxu0 %v305
    %368 = vmatprep.subr.mxu0 0.0
    %369 = vmatpush1.msra.mxu0 %v306
    %370 = vmatprep.subr.mxu0 0.0
    %371 = vmatpush1.msra.mxu0 %v307
    %372 = vmatprep.subr.mxu0 0.0
    %373 = vmatpush1.msra.mxu0 %v308
    %374 = vmatprep.subr.mxu0 0.0
    %375 = vmatpush1.msra.mxu0 %v309
    %376 = vmatprep.subr.mxu0 0.0
    %377 = vmatpush1.msra.mxu0 %v310
    %378 = vmatprep.subr.mxu0 0.0
    %379 = vmatpush1.msra.mxu0 %v311
    %380 = vmatprep.subr.mxu0 0.0
    %381 = vmatpush1.msra.mxu0 %v312
    %382 = vmatprep.subr.mxu0 0.0
    %383 = vmatpush1.msra.mxu0 %v313
    %384 = vmatprep.subr.mxu0 0.0
    %385 = vmatpush1.msra.mxu0 %v314
    %386 = vmatprep.mubr.f32.mxu0 %v282
    %387 = vmatmul.mubr.f32.gmra.mrb[0].mxu0 %v281
    %v388 = vpop.f32.mrb[0].mxu0
    %v389 = vadd.f32 %v320, %v388
    %v390 = vpop.f32.mrb[0].mxu0
    %391 = vdwg.mxu0
    %v392 = vmax.f32 %v389, -5.0
    %v393 = vmin.f32 %v392, 5.0
    %vm394 = vcmask 31744
    %395 = vst.msk [vmem:[%s7] sm:$0xff] %vm394, %v393
    // Predicated region
    $region46: #{tpu_custom_call.1} parent=1 // pred_check
      _
    $region47: #{tpu_custom_call.1} parent=1 // pred_check_branch
      %397 = sbr.rel (0) target = $region49
    $region48: #{tpu_custom_call.1} parent=1 // pred_region
      _
    $region49: #{tpu_custom_call.1} parent=1 // pred_fallthru
      _
    // Predicated region
    $region50: #{tpu_custom_call.1} parent=1 // pred_check
      _
    $region51: #{tpu_custom_call.1} parent=1 // pred_check_branch
      %399 = sbr.rel (0) target = $region53
    $region52: #{tpu_custom_call.1} parent=1 // pred_region
      _
    $region53: #{tpu_custom_call.1} parent=1 // pred_fallthru
      _
    %400 = vsyncpa [#allocation3], 1
    %401 = vsyncpa [#allocation5], 1
    %402 = vsyncpa [#allocation8], 1

</llo_original>
